<compile_context>
chip_gen: v7x
topology: tpu7x:2x2x1
jax: 0.10.0
libtpu: 0.0.40
codegen_flags: <defaults>
</compile_context>

<pallas_src>
import numpy as np

import jax
import jax.numpy as jnp
from jax.experimental import pallas as pl
from jax.experimental.pallas import tpu as pltpu

BOLTZMANN_CONST = 1.380649e-23
ELEMENTARY_CHARGE = 1.60217663e-19

# -------------------- static module parameters (match PyTorch defaults) ----
WEIGHT_QBITS = 8
INPUT_QBITS = 8
OUTPUT_QBITS = 10
TIA_GAIN = 1.0

LASER_GAIN = 0.2                     # Laser(optical_gain=0.2)
MZM_LOSS = 1.0                       # dB_to_linear(0)
Y_BRANCH_LOSS = 1.0                  # dB_to_linear(0)
MRR_LOSS = 1.0                       # dB_to_linear(0)
PD_RESPONSIVITY = 1.0
PD_DARK_CURRENT = 0.0
PD_HZ = 5.0 * 1e9
PD_T = 300.0
PD_RESISTANCE = 50.0
THERMAL_COEF = 4.0 * BOLTZMANN_CONST * PD_T * PD_HZ / PD_RESISTANCE
SHOT_COEF = 2.0 * ELEMENTARY_CHARGE * PD_HZ

INPUT_MAXQ = float(2 ** INPUT_QBITS - 1)     # 255
WEIGHT_MAXQ = float(2 ** WEIGHT_QBITS - 1)   # 255
OUTPUT_MAXQ = float(2 ** OUTPUT_QBITS - 1)   # 1023
MZM_VRANGE = 255.0                            # MZM voltage_max - voltage_min
ADC_VMAX = 255.0                              # ADC voltage_max default

# laser gain * MZM normalization * losses, applied once on the (2, TILE_B)
# matmul result instead of on every (K, B) element.
MULT_CONST = LASER_GAIN * Y_BRANCH_LOSS * MZM_LOSS * MRR_LOSS / MZM_VRANGE


def _optical_dot_kernel(scale_ref, x_ref, w_ref, noise_ref, out_ref):
    """scale_ref:(2,) SMEM  x_ref:(K,TB)  w_ref:(8,K) bf16  noise_ref:(4,TB)  out_ref:(1,TB)."""
    inv_in = scale_ref[0]        # 255 / input_normalization
    out_scale = scale_ref[1]     # static_scale * input_normalization

    # --- clamp + dynamic input quantization ---------------------------------
    # Result is an exact integer in [0, 255], so the input DAC's round/clamp
    # (and its *255/255) is a no-op and has been folded away.
    xq = jnp.round(jnp.maximum(x_ref[...], 0.0) * inv_in)             # (K, TB)

    # --- K-reduction on the MXU: (8, K) @ (K, TB) -> (8, TB), f32 acc --------
    # bf16 operands are exact here (integers in [0, 255]).
    pn = jnp.dot(w_ref[...], xq.astype(jnp.bfloat16),
                 preferred_element_type=jnp.float32)                  # (8, TB)

    pos = pn[0:1, :] * MULT_CONST                                     # (1, TB)
    neg = pn[1:2, :] * MULT_CONST                                     # (1, TB)

    # --- photodiodes (thermal + shot noise), difference, TIA -----------------
    noise = noise_ref[...]                                            # (4, TB)
    pd_pos = (pos * PD_RESPONSIVITY + PD_DARK_CURRENT
              + noise[0:1, :] * THERMAL_COEF) * (1.0 + noise[1:2, :] * SHOT_COEF)
    pd_neg = (neg * PD_RESPONSIVITY + PD_DARK_CURRENT
              + noise[2:3, :] * THERMAL_COEF) * (1.0 + noise[3:4, :] * SHOT_COEF)
    voltage = (pd_pos - pd_neg) * TIA_GAIN

    # --- ADC (10-bit over voltage range [0, 255]) + rescale to real units ----
    digital = jnp.round(jnp.clip(voltage * (1.0 / ADC_VMAX), 0.0, 1.0) * OUTPUT_MAXQ)
    out_ref[...] = digital * out_scale


def _pick_tile_b(B, K):
    """Largest lane-dense B tile that keeps a double-buffered f32 x tile small."""
    # 2 (double buffer) * K * TILE_B * 4 B  <=  ~8 MiB  -> safe on v5e/v6e/v7x.
    cap = max(128, ((8 * 1024 * 1024) // (8 * max(K, 1))) // 128 * 128)
    for t in (2048, 1024, 512, 256, 128):
        if t <= cap and B % t == 0:
            return t
    return 128


def make_optical_dot_product(weights_raw, *, tile_b=None):
    """Builds the deterministic 'module state' and returns a callable(x, noise)."""
    w_np = np.asarray(weights_raw, dtype=np.float32).reshape(-1)      # (K,)
    K = w_np.shape[0]

    wn = float(np.max(np.abs(w_np)))
    if wn <= 1e-9:
        wn = 1.0
    wq = np.round(w_np / wn * WEIGHT_MAXQ)                            # signed, in [-255, 255]
    # weight DAC(|wq|): round(clamp(|wq|, 0, 255)) -> exact integers in [0, 255]
    w_abs = np.round(np.clip(np.abs(wq), 0.0, WEIGHT_MAXQ)).astype(np.float32)
    pos_mask = (wq >= 0.0).astype(np.float32)

    # Effective weight matrix for the MXU reduction: row 0 = positive arm,
    # row 1 = negative arm, rows 2..7 zero (sublane padding, free on the MXU).
    w_eff = np.zeros((8, K), dtype=np.float32)
    w_eff[0] = w_abs * pos_mask
    w_eff[1] = w_abs * (1.0 - pos_mask)
    w_eff_j = jnp.asarray(w_eff, dtype=jnp.bfloat16)                  # exact in bf16

    # Static part of the output rescale (input_normalization folded in at runtime).
    static_scale = wn
    static_scale /= 2.0 ** (OUTPUT_QBITS - INPUT_QBITS)
    static_scale /= LASER_GAIN * MRR_LOSS * Y_BRANCH_LOSS * MZM_LOSS
    static_scale /= (PD_RESPONSIVITY + PD_RESPONSIVITY) / 2.0
    static_scale /= INPUT_MAXQ

    @jax.jit
    def forward(x, noise):
        # x: (K, B), noise: (4, B)
        B = x.shape[1]
        tb = tile_b if tile_b is not None else _pick_tile_b(B, K)

        # Global (whole-array) input normalization, hoisted out of the kernel;
        # computing it here is what makes per-tile processing of B valid.
        inorm_raw = jnp.max(jnp.maximum(x, 0.0))
        inorm = jnp.where(inorm_raw <= 1e-9, jnp.float32(1.0), inorm_raw)
        scales = jnp.stack([INPUT_MAXQ / inorm,
                            static_scale * inorm]).astype(jnp.float32)  # (2,) SMEM

        # Pad B up to a multiple of the lane-dense tile; padded columns produce
        # zeros in-kernel and are sliced off below (inorm already computed).
        pad = (-B) % tb
        if pad:
            x = jnp.pad(x, ((0, 0), (0, pad)))
            noise = jnp.pad(noise, ((0, 0), (0, pad)))
        Bp = B + pad
        grid_b = Bp // tb

        out = pl.pallas_call(
            _optical_dot_kernel,
            out_shape=jax.ShapeDtypeStruct((1, Bp), jnp.float32),
            grid=(grid_b,),
            in_specs=[
                pl.BlockSpec(memory_space=pltpu.MemorySpace.SMEM),    # scales (2,)
                pl.BlockSpec((K, tb), lambda i: (0, i)),              # x tile
                pl.BlockSpec((8, K), lambda i: (0, 0)),               # W_eff (resident)
                pl.BlockSpec((4, tb), lambda i: (0, i)),              # noise tile
            ],
            out_specs=pl.BlockSpec((1, tb), lambda i: (0, i)),        # lane-dense store
            compiler_params=pltpu.CompilerParams(
                dimension_semantics=("parallel",),
                vmem_limit_bytes=32 * 1024 * 1024),
        )(scales, x, w_eff_j, noise)
        return out[0, :B]                                             # (B,)

    return forward


if __name__ == "__main__":
    K, B = 32, 256          # dot-product length, small batch of input vectors

    key = jax.random.PRNGKey(0)
    kw, kx, kn = jax.random.split(key, 3)

    weights = jax.random.normal(kw, (K, 1), dtype=jnp.float32)        # signed weights
    x = jax.random.normal(kx, (K, B), dtype=jnp.float32) * 3.0        # some negatives too
    noise = jax.random.normal(kn, (4, B), dtype=jnp.float32)          # PD thermal/shot draws

    # tile_b=128 forces a 2-step parallel grid at this small demo size so the
    # tiled / pipelined path is exercised; at real sizes the auto-picker is used.
    optical_dot = make_optical_dot_product(weights, tile_b=128)
    out = optical_dot(x, noise)
    jax.block_until_ready(out)

    assert out.shape == (B,) and out.dtype == jnp.float32
    print("KERNEL_OK")
</pallas_src>

<mosaic_0001>
module attributes {stable_mosaic.version = 11 : i64} {
  func.func @_optical_dot_kernel(%arg0: i32, %arg1: memref<2xf32, #tpu.memory_space<smem>>, %arg2: memref<32x128xf32, #tpu.memory_space<vmem>>, %arg3: memref<8x32xbf16, #tpu.memory_space<vmem>>, %arg4: memref<4x128xf32, #tpu.memory_space<vmem>>, %arg5: memref<1x128xf32, #tpu.memory_space<vmem>>) attributes {dimension_semantics = [#tpu.dimension_semantics<parallel>], iteration_bounds = array<i64: 2>, scalar_prefetch = 0 : i64, scratch_operands = 0 : i64, tpu.core_type = #tpu.core_type<tc>, window_params = [{transform_indices = @transform_0, window_bounds = array<i64: 2>}, {transform_indices = @transform_1, window_bounds = array<i64: 32, 128>}, {pipeline_mode = #tpu.pipeline_mode<synchronous>, transform_indices = @transform_2, window_bounds = array<i64: 8, 32>}, {transform_indices = @transform_3, window_bounds = array<i64: 4, 128>}, {transform_indices = @transform_4, window_bounds = array<i64: 1, 128>}]} {
    %c0 = arith.constant 0 : index
    %0 = memref.load %arg1[%c0] : memref<2xf32, #tpu.memory_space<smem>>
    %c1 = arith.constant 1 : index
    %1 = memref.load %arg1[%c1] : memref<2xf32, #tpu.memory_space<smem>>
    %c0_0 = arith.constant 0 : index
    %c0_1 = arith.constant 0 : index
    %2 = vector.load %arg2[%c0_0, %c0_1] : memref<32x128xf32, #tpu.memory_space<vmem>>, vector<32x128xf32>
    %cst = arith.constant 0.000000e+00 : f32
    %3 = vector.broadcast %cst : f32 to vector<32x128xf32>
    %4 = arith.maximumf %2, %3 : vector<32x128xf32>
    %5 = vector.broadcast %0 : f32 to vector<32x128xf32>
    %6 = arith.mulf %4, %5 : vector<32x128xf32>
    %7 = math.roundeven %6 : vector<32x128xf32>
    %c0_2 = arith.constant 0 : index
    %c0_3 = arith.constant 0 : index
    %8 = vector.load %arg3[%c0_2, %c0_3] : memref<8x32xbf16, #tpu.memory_space<vmem>>, vector<8x32xbf16>
    %9 = arith.truncf %7 : vector<32x128xf32> to vector<32x128xbf16>
    %cst_4 = arith.constant dense<0.000000e+00> : vector<8x128xf32>
    %10 = tpu.matmul %8, %9, %cst_4 {dimension_numbers = #tpu.dot_dimension_numbers<[1], [0], [0], [1], [0, 0, 1, 1], [], []>} : vector<8x32xbf16>, vector<32x128xbf16>, vector<8x128xf32> -> vector<8x128xf32>
    %11 = vector.extract_strided_slice %10 {offsets = [0, 0], sizes = [1, 128], strides = [1, 1]} : vector<8x128xf32> to vector<1x128xf32>
    %cst_5 = arith.constant 7.84313714E-4 : f32
    %12 = vector.broadcast %cst_5 : f32 to vector<1x128xf32>
    %13 = arith.mulf %11, %12 : vector<1x128xf32>
    %14 = vector.extract_strided_slice %10 {offsets = [1, 0], sizes = [1, 128], strides = [1, 1]} : vector<8x128xf32> to vector<1x128xf32>
    %cst_6 = arith.constant 7.84313714E-4 : f32
    %15 = vector.broadcast %cst_6 : f32 to vector<1x128xf32>
    %16 = arith.mulf %14, %15 : vector<1x128xf32>
    %c0_7 = arith.constant 0 : index
    %c0_8 = arith.constant 0 : index
    %17 = vector.load %arg4[%c0_7, %c0_8] : memref<4x128xf32, #tpu.memory_space<vmem>>, vector<4x128xf32>
    %cst_9 = arith.constant 1.000000e+00 : f32
    %18 = vector.broadcast %cst_9 : f32 to vector<1x128xf32>
    %19 = arith.mulf %13, %18 : vector<1x128xf32>
    %cst_10 = arith.constant 0.000000e+00 : f32
    %20 = vector.broadcast %cst_10 : f32 to vector<1x128xf32>
    %21 = arith.addf %19, %20 : vector<1x128xf32>
    %22 = vector.extract_strided_slice %17 {offsets = [0, 0], sizes = [1, 128], strides = [1, 1]} : vector<4x128xf32> to vector<1x128xf32>
    %cst_11 = arith.constant 1.65677877E-12 : f32
    %23 = vector.broadcast %cst_11 : f32 to vector<1x128xf32>
    %24 = arith.mulf %22, %23 : vector<1x128xf32>
    %25 = arith.addf %21, %24 : vector<1x128xf32>
    %26 = vector.extract_strided_slice %17 {offsets = [1, 0], sizes = [1, 128], strides = [1, 1]} : vector<4x128xf32> to vector<1x128xf32>
    %cst_12 = arith.constant 1.60217661E-9 : f32
    %27 = vector.broadcast %cst_12 : f32 to vector<1x128xf32>
    %28 = arith.mulf %26, %27 : vector<1x128xf32>
    %cst_13 = arith.constant 1.000000e+00 : f32
    %29 = vector.broadcast %cst_13 : f32 to vector<1x128xf32>
    %30 = arith.addf %29, %28 : vector<1x128xf32>
    %31 = arith.mulf %25, %30 : vector<1x128xf32>
    %cst_14 = arith.constant 1.000000e+00 : f32
    %32 = vector.broadcast %cst_14 : f32 to vector<1x128xf32>
    %33 = arith.mulf %16, %32 : vector<1x128xf32>
    %cst_15 = arith.constant 0.000000e+00 : f32
    %34 = vector.broadcast %cst_15 : f32 to vector<1x128xf32>
    %35 = arith.addf %33, %34 : vector<1x128xf32>
    %36 = vector.extract_strided_slice %17 {offsets = [2, 0], sizes = [1, 128], strides = [1, 1]} : vector<4x128xf32> to vector<1x128xf32>
    %cst_16 = arith.constant 1.65677877E-12 : f32
    %37 = vector.broadcast %cst_16 : f32 to vector<1x128xf32>
    %38 = arith.mulf %36, %37 : vector<1x128xf32>
    %39 = arith.addf %35, %38 : vector<1x128xf32>
    %40 = vector.extract_strided_slice %17 {offsets = [3, 0], sizes = [1, 128], strides = [1, 1]} : vector<4x128xf32> to vector<1x128xf32>
    %cst_17 = arith.constant 1.60217661E-9 : f32
    %41 = vector.broadcast %cst_17 : f32 to vector<1x128xf32>
    %42 = arith.mulf %40, %41 : vector<1x128xf32>
    %cst_18 = arith.constant 1.000000e+00 : f32
    %43 = vector.broadcast %cst_18 : f32 to vector<1x128xf32>
    %44 = arith.addf %43, %42 : vector<1x128xf32>
    %45 = arith.mulf %39, %44 : vector<1x128xf32>
    %46 = arith.subf %31, %45 : vector<1x128xf32>
    %cst_19 = arith.constant 1.000000e+00 : f32
    %47 = vector.broadcast %cst_19 : f32 to vector<1x128xf32>
    %48 = arith.mulf %46, %47 : vector<1x128xf32>
    %cst_20 = arith.constant 0.00392156886 : f32
    %49 = vector.broadcast %cst_20 : f32 to vector<1x128xf32>
    %50 = arith.mulf %48, %49 : vector<1x128xf32>
    %cst_21 = arith.constant 0.000000e+00 : f32
    %cst_22 = arith.constant 1.000000e+00 : f32
    %51 = vector.broadcast %cst_21 : f32 to vector<1x128xf32>
    %52 = arith.maximumf %51, %50 : vector<1x128xf32>
    %53 = vector.broadcast %cst_22 : f32 to vector<1x128xf32>
    %54 = arith.minimumf %53, %52 : vector<1x128xf32>
    %cst_23 = arith.constant 1.023000e+03 : f32
    %55 = vector.broadcast %cst_23 : f32 to vector<1x128xf32>
    %56 = arith.mulf %54, %55 : vector<1x128xf32>
    %57 = math.roundeven %56 : vector<1x128xf32>
    %58 = vector.broadcast %1 : f32 to vector<1x128xf32>
    %59 = arith.mulf %57, %58 : vector<1x128xf32>
    %c0_24 = arith.constant 0 : index
    %c0_25 = arith.constant 0 : index
    %60 = vector.load %arg5[%c0_24, %c0_25] : memref<1x128xf32, #tpu.memory_space<vmem>>, vector<1x128xf32>
    tpu.vector_store %arg5[%c0_24, %c0_25], %59 {strides = array<i32>} : memref<1x128xf32, #tpu.memory_space<vmem>>, vector<1x128xf32>,
    return
  }
  func.func @transform_0(%arg0: i32) -> i32 {
    %c0_i32 = arith.constant 0 : i32
    %c0_i32_0 = arith.constant 0 : i32
    return %c0_i32 : i32
  }
  func.func @transform_1(%arg0: i32) -> (i32, i32) {
    %c0_i32 = arith.constant 0 : i32
    %c0_i32_0 = arith.constant 0 : i32
    return %c0_i32, %arg0 : i32, i32
  }
  func.func @transform_2(%arg0: i32) -> (i32, i32) {
    %c0_i32 = arith.constant 0 : i32
    %c0_i32_0 = arith.constant 0 : i32
    %c0_i32_1 = arith.constant 0 : i32
    return %c0_i32, %c0_i32_0 : i32, i32
  }
  func.func @transform_3(%arg0: i32) -> (i32, i32) {
    %c0_i32 = arith.constant 0 : i32
    %c0_i32_0 = arith.constant 0 : i32
    return %c0_i32, %arg0 : i32, i32
  }
  func.func @transform_4(%arg0: i32) -> (i32, i32) {
    %c0_i32 = arith.constant 0 : i32
    %c0_i32_0 = arith.constant 0 : i32
    return %c0_i32, %arg0 : i32, i32
  }
}

</mosaic_0001>

<llo_original>
// kernel: forward.1
$region0: #{forward.1}
  #allocation0 [shape = 'u32[]', space=smem, size = 0x4, offset = 0x4, fixed_abs, tag = 'smem constant byte address 0x4 - core index']
  #allocation1 [shape = 'u32[144,128]{1,0:T(1,128)}', space=vmem, size = 0x12000, scoped, tag = 'internal scratch']
  %s0 = inlined_call_operand.vmem [shape: f32[2], index: 0, kind: input, shape index: {}]
  %s1 = inlined_call_operand.vmem [shape: f32[32,256], index: 1, kind: input, shape index: {}]
  %s2 = inlined_call_operand.vmem [shape: bf16[8,32], index: 2, kind: input, shape index: {}]
  %s3 = inlined_call_operand.vmem [shape: f32[4,256], index: 3, kind: input, shape index: {}]
  %s4 = inlined_call_operand.hbm [shape: f32[1,256], index: 4, kind: output, shape index: {}]
  %s5 = sld [smem:[#allocation0]]
  $region91: #{forward.1} parent=0
    _
  %s7 = ssub.s32 1, %s5
  %s8 = scalar_select 0, %s7, %s5
  $region1: #{forward.1} parent=0
    #allocation2 [shape = 'u8[512]{0}', space=smem, size = 0x200, scoped, tag = 'input window, operand 0, single buffered']
    #allocation3 [shape = 's32[2]{0}', space=sflag, size = 0x8, scoped, tag = 'scoped memory for forward.1']
    #allocation4 [shape = 's32[2]{0}', space=sflag, size = 0x8, scoped, tag = 'scoped memory for forward.1']
    #allocation5 [shape = 'u8[32768]{0}', space=vmem, size = 0x8000, scoped, tag = 'input window, operand 1']
    #allocation6 [shape = 'u8[1024]{0}', space=vmem, size = 0x400, scoped, tag = 'output window, operand 0']
    %9 = vsyncpa [#allocation4], 0
    %10 = vsyncpa [#allocation3], 0
    %s11 = scalar_lea.sflag [#allocation3], 1
    %12 = vsyncpa %s11, 0
    loop: start=0, step=1, limit=4
    $region2: #{forward.1} parent=1 // loop_pre_header
      _
    $region3: #{forward.1} parent=1 // loop_header
      %s14 = sphi 0, %s18
      %p15 = scmp.ge.s32.totalorder %s14, 4
      %s22 = sphi 0, %s22
      %s24 = sphi 0, %s22
      %s25 = sphi 0, %s24
      %s39 = sphi 0, %s25
      %s45 = sphi 0, %s47
      %s48 = sphi 0, %s45
      %s49 = sphi 0, %s48
      %s65 = sphi 0, %s49
      %s69 = sphi 0, %s69
      %s71 = sphi 0, %s69
      %s72 = sphi 0, %s71
      %s86 = sphi 0, %s72
      %s92 = sphi 0, %s94
      %s95 = sphi 0, %s92
      %s96 = sphi 0, %s95
      %s112 = sphi 0, %s96
      %s118 = sphi 0, %s120
      %s121 = sphi 0, %s118
      %s122 = sphi 0, %s121
      %s138 = sphi 0, %s122
    $region4: #{forward.1} parent=1 // loop_header_branch
      %17 = sbr.rel (%p15) target = $region8
    $region5: #{forward.1} parent=1 // loop_body
      %s19 = ssub.s32 %s14, 1
      %s20 = ssub.s32 %s14, 2
      %s21 = sadd.s32 %s14, 1
      %s23 = sadd.s32 %s22, 1
      %p26 = scmp.eq.s32.totalorder %s14, 1
      %p27 = scmp.ne.s32.totalorder %s22, %s24
      %p28 = scmp.eq.s32.totalorder %s14, 0
      %p29 = por %p27, %p28
      %p30 = scmp.ne.s32.totalorder %s22, %s24
      %p31 = scmp.eq.s32.totalorder %s19, 1
      %p32 = por %p30, %p31
      %p33 = scmp.ne.s32.totalorder %s24, %s25
      %p34 = scmp.eq.s32.totalorder %s19, 0
      %p35 = por %p33, %p34
      %p36 = scmp.ne.s32.totalorder %s24, %s25
      %p37 = scmp.eq.s32.totalorder %s20, 1
      %p38 = por %p36, %p37
      %p40 = scmp.ne.s32.totalorder %s25, %s39
      %p41 = scmp.eq.s32.totalorder %s20, 0
      %p42 = por %p40, %p41
      %s43 = ssub.s32 %s14, %s21
      %p44 = scmp.eq.s32.totalorder %s43, 0
      %s46 = sadd.s32 %s45, 1
      %s47 = scalar_select %p44, %s45, %s46
      %p50 = pneg %p44
      %p51 = scmp.eq.s32.totalorder %s14, 1
      %p52 = por %p50, %p51
      %p53 = scmp.ne.s32.totalorder %s45, %s48
      %p54 = scmp.eq.s32.totalorder %s14, 0
      %p55 = por %p53, %p54
      %p56 = scmp.ne.s32.totalorder %s45, %s48
      %p57 = scmp.eq.s32.totalorder %s19, 1
      %p58 = por %p56, %p57
      %p59 = scmp.ne.s32.totalorder %s48, %s49
      %p60 = scmp.eq.s32.totalorder %s19, 0
      %p61 = por %p59, %p60
      %p62 = scmp.ne.s32.totalorder %s48, %s49
      %p63 = scmp.eq.s32.totalorder %s20, 1
      %p64 = por %p62, %p63
      %p66 = scmp.ne.s32.totalorder %s49, %s65
      %p67 = scmp.eq.s32.totalorder %s20, 0
      %p68 = por %p66, %p67
      %s70 = sadd.s32 %s69, 1
      %p73 = scmp.eq.s32.totalorder %s14, 1
      %p74 = scmp.ne.s32.totalorder %s69, %s71
      %p75 = scmp.eq.s32.totalorder %s14, 0
      %p76 = por %p74, %p75
      %p77 = scmp.ne.s32.totalorder %s69, %s71
      %p78 = scmp.eq.s32.totalorder %s19, 1
      %p79 = por %p77, %p78
      %p80 = scmp.ne.s32.totalorder %s71, %s72
      %p81 = scmp.eq.s32.totalorder %s19, 0
      %p82 = por %p80, %p81
      %p83 = scmp.ne.s32.totalorder %s71, %s72
      %p84 = scmp.eq.s32.totalorder %s20, 1
      %p85 = por %p83, %p84
      %p87 = scmp.ne.s32.totalorder %s72, %s86
      %p88 = scmp.eq.s32.totalorder %s20, 0
      %p89 = por %p87, %p88
      %s90 = ssub.s32 %s14, %s21
      %p91 = scmp.eq.s32.totalorder %s90, 0
      %s93 = sadd.s32 %s92, 1
      %s94 = scalar_select %p91, %s92, %s93
      %p97 = pneg %p91
      %p98 = scmp.eq.s32.totalorder %s14, 1
      %p99 = por %p97, %p98
      %p100 = scmp.ne.s32.totalorder %s92, %s95
      %p101 = scmp.eq.s32.totalorder %s14, 0
      %p102 = por %p100, %p101
      %p103 = scmp.ne.s32.totalorder %s92, %s95
      %p104 = scmp.eq.s32.totalorder %s19, 1
      %p105 = por %p103, %p104
      %p106 = scmp.ne.s32.totalorder %s95, %s96
      %p107 = scmp.eq.s32.totalorder %s19, 0
      %p108 = por %p106, %p107
      %p109 = scmp.ne.s32.totalorder %s95, %s96
      %p110 = scmp.eq.s32.totalorder %s20, 1
      %p111 = por %p109, %p110
      %p113 = scmp.ne.s32.totalorder %s96, %s112
      %p114 = scmp.eq.s32.totalorder %s20, 0
      %p115 = por %p113, %p114
      %s116 = ssub.s32 %s14, %s21
      %p117 = scmp.eq.s32.totalorder %s116, 0
      %s119 = sadd.s32 %s118, 1
      %s120 = scalar_select %p117, %s118, %s119
      %p123 = pneg %p117
      %p124 = scmp.eq.s32.totalorder %s14, 1
      %p125 = por %p123, %p124
      %p126 = scmp.ne.s32.totalorder %s118, %s121
      %p127 = scmp.eq.s32.totalorder %s14, 0
      %p128 = por %p126, %p127
      %p129 = scmp.ne.s32.totalorder %s118, %s121
      %p130 = scmp.eq.s32.totalorder %s19, 1
      %p131 = por %p129, %p130
      %p132 = scmp.ne.s32.totalorder %s121, %s122
      %p133 = scmp.eq.s32.totalorder %s19, 0
      %p134 = por %p132, %p133
      %p135 = scmp.ne.s32.totalorder %s121, %s122
      %p136 = scmp.eq.s32.totalorder %s20, 1
      %p137 = por %p135, %p136
      %p139 = scmp.ne.s32.totalorder %s122, %s138
      %p140 = scmp.eq.s32.totalorder %s20, 0
      %p141 = por %p139, %p140
      %p142 = scmp.le.s32.totalorder 1, %s14
      %p143 = scmp.lt.s32.totalorder %s14, 3
      %p144 = pnand %p142, %p143
      %p145 = pneg %p144
      // Predicated region
      $region9: #{forward.1} parent=5 // pred_check
        _
      $region10: #{forward.1} parent=5 // pred_check_branch
        %147 = sbr.rel (%p144) target = $region12
      $region11: #{forward.1} parent=5 // pred_region
        %s148 = ssub.s32 %s14, 1
        // Predicated region
        $region13: #{forward.1} parent=11 // pred_check
          %p149 = pneg %p35
        $region14: #{forward.1} parent=11 // pred_check_branch
          %151 = sbr.rel (%p149) target = $region16
        $region15: #{forward.1} parent=11 // pred_region
          %s153 = ssub.s32 16, 16
          %154 = vsyncadd [#allocation4], %s153
          %s156 = sshll.u32 %s0, 4
          %s157 = int_to_ptr.vmem [resolvable:$true] %s156
          %159 = dma.vmem_to_smem %s157, 16, [#allocation2], [#allocation4]
        $region16: #{forward.1} parent=11 // pred_fallthru
          _
        // Predicated region
        $region17: #{forward.1} parent=11 // pred_check
          %p160 = pneg %p82
        $region18: #{forward.1} parent=11 // pred_check_branch
          %162 = sbr.rel (%p160) target = $region20
        $region19: #{forward.1} parent=11 // pred_region
          _
        $region20: #{forward.1} parent=11 // pred_fallthru
          _
      $region12: #{forward.1} parent=5 // pred_fallthru
        _
      %p163 = scmp.lt.s32.totalorder %s14, 2
      // Predicated region
      $region21: #{forward.1} parent=5 // pred_check
        %p164 = pneg %p163
      $region22: #{forward.1} parent=5 // pred_check_branch
        %166 = sbr.rel (%p164) target = $region24
      $region23: #{forward.1} parent=5 // pred_region
        // Predicated region
        $region25: #{forward.1} parent=23 // pred_check
          %p167 = pneg %p55
        $region26: #{forward.1} parent=23 // pred_check_branch
          %169 = sbr.rel (%p167) target = $region28
        $region27: #{forward.1} parent=23 // pred_region
          %s170 = sand.u32 %s45, 1
          %s171 = sand.u32 %s45, 1
          %s172 = smul.addr %s171, 32
          %s173 = scalar_lea.vmem [#allocation5], %s172
          %s174 = smul.addr %s14, 8
          %s175 = scalar_lea.vmem %s1, %s174
          // Predicated region
          $region29: #{forward.1} parent=27 // pred_check
            _
          $region30: #{forward.1} parent=27 // pred_check_branch
            %177 = sbr.rel (0) target = $region32
          $region31: #{forward.1} parent=27 // pred_region
            // Predicated region
            $region33: #{forward.1} parent=31 // pred_check
              _
            $region34: #{forward.1} parent=31 // pred_check_branch
              %179 = sbr.rel (0) target = $region36
            $region35: #{forward.1} parent=31 // pred_region
              // Predicated region
              $region48: #{forward.1} parent=35 // pred_check
                _
              $region49: #{forward.1} parent=35 // pred_check_branch
                %200 = sbr.rel (0) target = $region51
              $region50: #{forward.1} parent=35 // pred_region
                loop: start=0, step=1, limit=1
                $region52: #{forward.1} parent=50 // loop_pre_header
                  _
                $region53: #{forward.1} parent=50 // loop_header
                  %s202 = sphi 0, %s206
                  %p203 = scmp.ge.s32.totalorder %s202, 1
                  %s207 = sphi %s175, %s175
                  %s208 = sphi %s173, %s173
                $region54: #{forward.1} parent=50 // loop_header_branch
                  %205 = sbr.rel (%p203) target = $region58
                $region55: #{forward.1} parent=50 // loop_body
                  %v209 = vld [vmem:[%s207] sm:$0xff]
                  %210 = vst [vmem:[%s208] sm:$0xff] %v209
                  %v211 = vld [vmem:[%s207 + $0x10] sm:$0xff]
                  %212 = vst [vmem:[%s208 + $0x8] sm:$0xff] %v211
                  %v213 = vld [vmem:[%s207 + $0x20] sm:$0xff]
                  %214 = vst [vmem:[%s208 + $0x10] sm:$0xff] %v213
                  %v215 = vld [vmem:[%s207 + $0x30] sm:$0xff]
                  %216 = vst [vmem:[%s208 + $0x18] sm:$0xff] %v215
                $region56: #{forward.1} parent=50 // loop_footer
                  %s206 = sadd.s32 1, %s202
                $region57: #{forward.1} parent=50 // loop_footer_branch
                  %201 = sbr.rel target = $region53
                $region58: #{forward.1} parent=50 // loop_exit
                  _
              $region51: #{forward.1} parent=35 // pred_fallthru
                _
              // Predicated region
              $region59: #{forward.1} parent=35 // pred_check
                _
              $region60: #{forward.1} parent=35 // pred_check_branch
                %218 = sbr.rel target = $region62
              $region61: #{forward.1} parent=35 // pred_region
                _
              $region62: #{forward.1} parent=35 // pred_fallthru
                _
            $region36: #{forward.1} parent=31 // pred_fallthru
              _
            // Predicated region
            $region37: #{forward.1} parent=31 // pred_check
              _
            $region38: #{forward.1} parent=31 // pred_check_branch
              %181 = sbr.rel target = $region40
            $region39: #{forward.1} parent=31 // pred_region
              loop: start=0, step=1, limit=1
              $region41: #{forward.1} parent=39 // loop_pre_header
                _
              $region42: #{forward.1} parent=39 // loop_header
                %s184 = sphi 0, %s188
                %p185 = scmp.ge.s32.totalorder %s184, 1
                %s189 = sphi %s175, %s175
                %s190 = sphi %s173, %s173
              $region43: #{forward.1} parent=39 // loop_header_branch
                %187 = sbr.rel (%p185) target = $region47
              $region44: #{forward.1} parent=39 // loop_body
                %v191 = vld [vmem:[%s189] sm:$0xff]
                %192 = vst [vmem:[%s190] sm:$0xff] %v191
                %v193 = vld [vmem:[%s189 + $0x10] sm:$0xff]
                %194 = vst [vmem:[%s190 + $0x8] sm:$0xff] %v193
                %v195 = vld [vmem:[%s189 + $0x20] sm:$0xff]
                %196 = vst [vmem:[%s190 + $0x10] sm:$0xff] %v195
                %v197 = vld [vmem:[%s189 + $0x30] sm:$0xff]
                %198 = vst [vmem:[%s190 + $0x18] sm:$0xff] %v197
              $region45: #{forward.1} parent=39 // loop_footer
                %s188 = sadd.s32 1, %s184
              $region46: #{forward.1} parent=39 // loop_footer_branch
                %183 = sbr.rel target = $region42
              $region47: #{forward.1} parent=39 // loop_exit
                _
            $region40: #{forward.1} parent=31 // pred_fallthru
              _
          $region32: #{forward.1} parent=27 // pred_fallthru
            _
          %219 = vnop
        $region28: #{forward.1} parent=23 // pred_fallthru
          _
        // Predicated region
        $region63: #{forward.1} parent=23 // pred_check
          %p220 = pneg %p102
        $region64: #{forward.1} parent=23 // pred_check_branch
          %222 = sbr.rel (%p220) target = $region66
        $region65: #{forward.1} parent=23 // pred_region
          %p223 = scmp.lt.s32.totalorder %s14, 1
          %s224 = scalar_select %p223, %s14, 1
          %s225 = smul.addr %s224, 4
          %s226 = scalar_lea.vmem %s3, %s225
        $region66: #{forward.1} parent=23 // pred_fallthru
          _
      $region24: #{forward.1} parent=5 // pred_fallthru
        _
      %p227 = scmp.le.s32.totalorder 1, %s14
      %p228 = scmp.lt.s32.totalorder %s14, 3
      %p229 = pnand %p227, %p228
      %p230 = pneg %p229
      // Predicated region
      $region67: #{forward.1} parent=5 // pred_check
        _
      $region68: #{forward.1} parent=5 // pred_check_branch
        %232 = sbr.rel (%p229) target = $region70
      $region69: #{forward.1} parent=5 // pred_region
        %s233 = ssub.s32 %s14, 1
        // Predicated region
        $region71: #{forward.1} parent=69 // pred_check
          %p234 = pneg %p35
        $region72: #{forward.1} parent=69 // pred_check_branch
          %236 = sbr.rel (%p234) target = $region74
        $region73: #{forward.1} parent=69 // pred_region
          %237 = dma.done [#allocation4], 16
        $region74: #{forward.1} parent=69 // pred_fallthru
          _
        %s238 = sand.u32 %s48, 1
        %s239 = sand.u32 %s48, 1
        %s240 = smul.addr %s239, 32
        %s241 = scalar_lea.vmem [#allocation5], %s240
        // Predicated region
        $region75: #{forward.1} parent=69 // pred_check
          %p242 = pneg %p61
        $region76: #{forward.1} parent=69 // pred_check_branch
          %244 = sbr.rel (%p242) target = $region78
        $region77: #{forward.1} parent=69 // pred_region
          _
        $region78: #{forward.1} parent=69 // pred_fallthru
          _
        %245 = sfence
        %p246 = pneg %p35
        %p247 = pneg %p32
        %s248 = sand.u32 %s48, 1
        %s249 = sand.u32 %s48, 1
        %s250 = smul.addr %s249, 32
        %s251 = scalar_lea.vmem [#allocation5], %s250
        %p252 = pneg %p61
        %p253 = pneg %p58
        %p254 = pneg %p82
        %p255 = pneg %p79
        %p256 = scmp.lt.s32.totalorder %s19, 1
        %s257 = scalar_select %p256, %s19, 1
        %s258 = smul.addr %s257, 4
        %s259 = scalar_lea.vmem %s3, %s258
        %p260 = pneg %p108
        %p261 = pneg %p105
        %p262 = pneg %p134
        %p263 = pneg %p131
        %s264 = sand.u32 %s121, 1
        %s265 = scalar_lea.sflag [#allocation3], %s264
        %s266 = sand.u32 %s121, 1
        %s267 = scalar_lea.vmem [#allocation6], %s266
        %p268 = scmp.lt.s32.totalorder %s19, 1
        %s269 = scalar_select %p268, %s19, 1
        %s270 = smul.addr %s269, 4
        %s271 = scalar_lea.vmem %s3, %s270
        %s273 = sld [smem:[#allocation2]]
        %s274 = sld [smem:[#allocation2 + $0x1]]
        %v275 = vld [vmem:[%s241] sm:$0xff]
        %v276 = vld [vmem:[%s241 + $0x8] sm:$0xff]
        %v277 = vld [vmem:[%s241 + $0x10] sm:$0xff]
        %v278 = vld [vmem:[%s241 + $0x18] sm:$0xff]
        %v279 = vmax.f32 %v275, 0.0
        %v280 = vmax.f32 %v276, 0.0
        %v281 = vmax.f32 %v277, 0.0
        %v282 = vmax.f32 %v278, 0.0
        %v283 = vstv %s273
        %v284 = vmul.f32 %v279, %v283
        %v285 = vmul.f32 %v280, %v283
        %v286 = vmul.f32 %v281, %v283
        %v287 = vmul.f32 %v282, %v283
        %v288 = vround.ne.pseudo %v284
        %v289 = vround.ne.pseudo %v285
        %v290 = vround.ne.pseudo %v286
        %v291 = vround.ne.pseudo %v287
        %v292 = vld [vmem:[%s2] sm:$0xf]
        %v293 = vpack.c.bf16 %v289, %v288
        %v294 = vpack.c.bf16 %v291, %v290
        %vm295 = vcmask 261120
        %v297 = vsel %vm295, %v292, 0
        %299 = vmatprep.subr.bf16.mxu0 0
        %300 = vmatpush1.bf16.msra.mxu0 %v293
        %301 = vmatprep.subr.bf16.mxu0 0
        %302 = vmatpush1.bf16.msra.mxu0 %v294
        %303 = vmatprep.subr.bf16.mxu0 0
        %304 = vmatpush1.bf16.msra.mxu0 0
        %305 = vmatprep.subr.bf16.mxu0 0
        %306 = vmatpush1.bf16.msra.mxu0 0
        %307 = vmatprep.subr.bf16.mxu0 0
        %308 = vmatpush1.bf16.msra.mxu0 0
        %309 = vmatprep.subr.bf16.mxu0 0
        %310 = vmatpush1.bf16.msra.mxu0 0
        %311 = vmatprep.subr.bf16.mxu0 0
        %312 = vmatpush1.bf16.msra.mxu0 0
        %313 = vmatprep.subr.bf16.mxu0 0
        %314 = vmatpush1.bf16.msra.mxu0 0
        %315 = vmatprep.subr.bf16.mxu0 0
        %316 = vmatpush1.bf16.msra.mxu0 0
        %317 = vmatprep.subr.bf16.mxu0 0
        %318 = vmatpush1.bf16.msra.mxu0 0
        %319 = vmatprep.subr.bf16.mxu0 0
        %320 = vmatpush1.bf16.msra.mxu0 0
        %321 = vmatprep.subr.bf16.mxu0 0
        %322 = vmatpush1.bf16.msra.mxu0 0
        %323 = vmatprep.subr.bf16.mxu0 0
        %324 = vmatpush1.bf16.msra.mxu0 0
        %325 = vmatprep.subr.bf16.mxu0 0
        %326 = vmatpush1.bf16.msra.mxu0 0
        %327 = vmatprep.subr.bf16.mxu0 0
        %328 = vmatpush1.bf16.msra.mxu0 0
        %329 = vmatprep.subr.bf16.mxu0 0
        %330 = vmatpush1.bf16.msra.mxu0 0
        %331 = vmatprep.mubr.bf16.mxu0 0
        %332 = vmatmul.mubr.bf16.gmra.mrb[0].mxu0 %v297
        %v333 = vpop.f32.mrb[0].mxu0
        %v334 = vadd.f32 0.0, %v333
        %v335 = vpop.f32.mrb[0].mxu0
        %v336 = vpop.f32.mrb[0].mxu0
        %v337 = vpop.f32.mrb[0].mxu0
        %338 = vdwg.mxu0
        %v339 = vmul.f32 %v334, 0.0007843137
        %v340 = vld [vmem:[%s271] sm:$0xf]
        %v341 = vadd.f32 %v339, 0.0
        %v342 = vmul.f32 %v340, 1.6567788e-12
        %v343 = vadd.f32 %v341, %v342
        %v344 = vmul.f32 %v340, 1.6021766e-09
        %v345 = vadd.f32 %v344, 1.0
        %v347 = vrot.slane %v345, 1
        %v349 = vmul.f32 %v343, %v347
        %v351 = vrot.slane %v342, 1
        %v353 = vadd.f32 %v341, %v351
        %v354 = vrot.slane %v345, 2
        %v356 = vmul.f32 %v353, %v354
        %v358 = vrot.slane %v356, 1
        %v360 = vsub.f32 %v349, %v358
        %v361 = vmul.f32 %v360, 0.003921569
        %v362 = vmax.f32 %v361, 0.0
        %v363 = vmin.f32 %v362, 1.0
        %v364 = vmul.f32 %v363, 1023.0
        %v365 = vround.ne.pseudo %v364
        %v366 = vstv %s274
        %v367 = vmul.f32 %v365, %v366
        %368 = vst [vmem:[%s267] sm:$0x1] %v367
        %s369 = sand.u32 %s121, 1
        %s370 = scalar_lea.sflag [#allocation3], %s369
        %s371 = sand.u32 %s121, 1
        %s372 = scalar_lea.vmem [#allocation6], %s371
        // Predicated region
        $region79: #{forward.1} parent=69 // pred_check
          %p373 = pneg %p131
        $region80: #{forward.1} parent=69 // pred_check_branch
          %375 = sbr.rel (%p373) target = $region82
        $region81: #{forward.1} parent=69 // pred_region
          %s377 = ssub.s32 16, 16
          %378 = vsyncadd %s370, %s377
          %s379 = smul.addr %s19, 16
          %s380 = scalar_lea.hbm %s4, %s379
          %s382 = sshll.u32 %s372, 4
          %s383 = int_to_ptr.vmem [resolvable:$true] %s382
          %385 = dma.vmem_to_hbm [thread:$0]  %s383, 16, %s380, %s370
        $region82: #{forward.1} parent=69 // pred_fallthru
          _
      $region70: #{forward.1} parent=5 // pred_fallthru
        _
      %p386 = scmp.le.s32.totalorder 2, %s14
      // Predicated region
      $region83: #{forward.1} parent=5 // pred_check
        %p387 = pneg %p386
      $region84: #{forward.1} parent=5 // pred_check_branch
        %389 = sbr.rel (%p387) target = $region86
      $region85: #{forward.1} parent=5 // pred_region
        %s390 = ssub.s32 %s14, 2
        // Predicated region
        $region87: #{forward.1} parent=85 // pred_check
          %p391 = pneg %p137
        $region88: #{forward.1} parent=85 // pred_check_branch
          %393 = sbr.rel (%p391) target = $region90
        $region89: #{forward.1} parent=85 // pred_region
          %s394 = sand.u32 %s122, 1
          %s395 = scalar_lea.sflag [#allocation3], %s394
          %s396 = sand.u32 %s122, 1
          %s397 = scalar_lea.vmem [#allocation6], %s396
          %398 = dma.done %s395, 16
        $region90: #{forward.1} parent=85 // pred_fallthru
          _
      $region86: #{forward.1} parent=5 // pred_fallthru
        _
    $region6: #{forward.1} parent=1 // loop_footer
      %s18 = sadd.s32 1, %s14
    $region7: #{forward.1} parent=1 // loop_footer_branch
      %13 = sbr.rel target = $region3
    $region8: #{forward.1} parent=1 // loop_exit
      _
    %399 = vsyncpa [#allocation3], 1
    %s400 = scalar_lea.sflag [#allocation3], 1
    %401 = vsyncpa %s400, 1
    %402 = vsyncpa [#allocation4], 1
    %s403 = scalar_lea.sflag [#allocation4], 1
    %404 = vsyncpa %s403, 1

</llo_original>
